<compile_context>
chip_gen: v7x
topology: tpu7x:2x2x1
jax: 0.10.0
libtpu: 0.0.40
codegen_flags: <defaults>
</compile_context>

<pallas_src>
import jax
import jax.numpy as jnp
from jax import lax
from jax.experimental import pallas as pl
from jax.experimental.pallas import tpu as pltpu

SMOOTHING = 0.1


def _choose_tile_n(n, c, itemsize):
    """Pick a batch tile so 2x double-buffered pred blocks stay small."""
    budget_bytes = 2 * 1024 * 1024                # per pred block
    t = budget_bytes // max(1, c * itemsize)
    t = max(16, min(int(t), 1024))
    t = (t // 16) * 16                            # sublane-pack friendly (bf16 too)
    if n <= t:
        return n                                  # block == full dim: always legal
    return t


def _make_kernel(n_total, n_classes, tile_n, smoothing):
    confidence = 1.0 - smoothing
    off = smoothing / (n_classes - 1)             # GLOBAL class count
    inv_n = 1.0 / float(n_total)                  # GLOBAL batch size
    needs_mask = (n_total % tile_n) != 0

    def kernel(pred_ref, tgt_ref, out_ref):
        i = pl.program_id(0)

        @pl.when(i == 0)
        def _init():
            out_ref[0, 0] = jnp.float32(0.0)

        x = pred_ref[...].astype(jnp.float32)                 # (tile_n, C)
        tn, c = x.shape

        # Numerically-stable log-softmax pieces (no (tn, C) log_probs tensor).
        m = jnp.max(x, axis=-1, keepdims=True)                # (tile_n, 1)
        z = x - m
        lse = jnp.log(jnp.sum(jnp.exp(z), axis=-1, keepdims=True))
        sum_z = jnp.sum(z, axis=-1, keepdims=True)            # (tile_n, 1)

        # z at the target class via one-hot compare + lane reduce.
        class_ids = lax.broadcasted_iota(jnp.int32, (tn, c), dimension=1)
        tgt = tgt_ref[...]                                    # (tile_n, 1) int32
        z_t = jnp.sum(jnp.where(class_ids == tgt, z, 0.0),
                      axis=-1, keepdims=True)                 # (tile_n, 1)

        # loss_row = -( off * sum_c logp + (conf - off) * logp_target )
        per_row = -(off * (sum_z - float(n_classes) * lse)
                    + (confidence - off) * (z_t - lse))       # (tile_n, 1)

        if needs_mask:
            row_ids = i * tile_n + lax.broadcasted_iota(jnp.int32, (tn, 1), 0)
            per_row = jnp.where(row_ids < n_total, per_row, 0.0)

        out_ref[0, 0] += jnp.sum(per_row)

        @pl.when(i == pl.num_programs(0) - 1)
        def _finalize():
            out_ref[0, 0] = out_ref[0, 0] * jnp.float32(inv_n)

    return kernel


def label_smoothing_loss(pred, target, smoothing=SMOOTHING, tile_n=None):
    """pred: (N, C) float (any dtype, DMA'd natively); target: (N,) int.

    Returns scalar f32 loss matching the PyTorch LabelSmoothingLoss forward.
    """
    n, c = pred.shape
    tgt2d = target.astype(jnp.int32).reshape(n, 1)
    if tile_n is None:
        tile_n = _choose_tile_n(n, c, jnp.dtype(pred.dtype).itemsize)
    num_tiles = pl.cdiv(n, tile_n)

    out = pl.pallas_call(
        _make_kernel(n, c, tile_n, smoothing),
        out_shape=jax.ShapeDtypeStruct((1, 1), jnp.float32),
        grid_spec=pltpu.PrefetchScalarGridSpec(
            num_scalar_prefetch=0,
            grid=(num_tiles,),
            in_specs=[
                pl.BlockSpec((tile_n, c), lambda i: (i, 0)),
                pl.BlockSpec((tile_n, 1), lambda i: (i, 0)),
            ],
            out_specs=pl.BlockSpec(memory_space=pltpu.SMEM),
        ),
        compiler_params=pltpu.CompilerParams(
            dimension_semantics=("arbitrary",),       # batch axis is a reduction
            vmem_limit_bytes=32 * 1024 * 1024,
        ),
    )(pred, tgt2d)
    return out[0, 0]


def _reference(pred, target):
    logp = jax.nn.log_softmax(pred.astype(jnp.float32), axis=-1)
    n, c = pred.shape
    true_dist = jnp.full((n, c), SMOOTHING / (c - 1), jnp.float32)
    true_dist = true_dist.at[jnp.arange(n), target].set(1.0 - SMOOTHING)
    return jnp.mean(jnp.sum(-true_dist * logp, axis=-1))


if __name__ == "__main__":
    key = jax.random.PRNGKey(0)
    k1, k2, k3, k4 = jax.random.split(key, 4)

    # Case 1: f32 input, single tile (block == full array).
    n1, c1 = 16, 128
    pred1 = jax.random.normal(k1, (n1, c1), dtype=jnp.float32)
    tgt1 = jax.random.randint(k2, (n1,), 0, c1, dtype=jnp.int32)
    loss1 = label_smoothing_loss(pred1, tgt1)
    jax.block_until_ready(loss1)
    ref1 = _reference(pred1, tgt1)
    assert jnp.allclose(loss1, ref1, atol=1e-5, rtol=1e-5), (loss1, ref1)

    # Case 2: native bf16 DMA + multi-tile grid with a masked partial last tile
    # (N=40 is not a multiple of tile_n=16).
    n2, c2 = 40, 128
    pred2 = jax.random.normal(k3, (n2, c2), dtype=jnp.float32).astype(jnp.bfloat16)
    tgt2 = jax.random.randint(k4, (n2,), 0, c2, dtype=jnp.int32)
    loss2 = label_smoothing_loss(pred2, tgt2, tile_n=16)
    jax.block_until_ready(loss2)
    ref2 = _reference(pred2, tgt2)
    assert jnp.allclose(loss2, ref2, atol=1e-4, rtol=1e-4), (loss2, ref2)

    print("KERNEL_OK")
</pallas_src>

<mosaic_0001>
module attributes {stable_mosaic.version = 11 : i64} {
  func.func @kernel(%arg0: i32, %arg1: memref<16x128xf32, #tpu.memory_space<vmem>>, %arg2: memref<16x1xi32, #tpu.memory_space<vmem>>, %arg3: memref<1x1xf32, #tpu.memory_space<smem>>) attributes {dimension_semantics = [#tpu.dimension_semantics<arbitrary>], iteration_bounds = array<i64: 1>, scalar_prefetch = 0 : i64, scratch_operands = 0 : i64, tpu.core_type = #tpu.core_type<tc>, window_params = [{transform_indices = @transform_0, window_bounds = array<i64: 16, 128>}, {transform_indices = @transform_1, window_bounds = array<i64: 16, 1>}, {transform_indices = @transform_2, window_bounds = array<i64: 1, 1>}]} {
    %c0_i32 = arith.constant 0 : i32
    %0 = arith.cmpi eq, %arg0, %c0_i32 : i32
    %1 = arith.extui %0 : i1 to i32
    %c0_i32_0 = arith.constant 0 : i32
    %2 = arith.cmpi ne, %1, %c0_i32_0 : i32
    scf.if %2 {
      %cst_19 = arith.constant 0.000000e+00 : f32
      %c0_20 = arith.constant 0 : index
      %c0_21 = arith.constant 0 : index
      %43 = memref.load %arg3[%c0_20, %c0_21] : memref<1x1xf32, #tpu.memory_space<smem>>
      memref.store %cst_19, %arg3[%c0_20, %c0_21] : memref<1x1xf32, #tpu.memory_space<smem>>
    } else {
    }
    %c0 = arith.constant 0 : index
    %c0_1 = arith.constant 0 : index
    %3 = vector.load %arg1[%c0, %c0_1] : memref<16x128xf32, #tpu.memory_space<vmem>>, vector<16x128xf32>
    %cst = arith.constant dense<0xFF800000> : vector<16xf32>
    %4 = vector.multi_reduction <maximumf>, %3, %cst [1] : vector<16x128xf32> to vector<16xf32>
    %5 = vector.shape_cast %4 : vector<16xf32> to vector<16x1xf32>
    %6 = vector.broadcast %5 : vector<16x1xf32> to vector<16x128xf32>
    %7 = arith.subf %3, %6 : vector<16x128xf32>
    %8 = math.exp %7 : vector<16x128xf32>
    %cst_2 = arith.constant dense<0.000000e+00> : vector<16xf32>
    %9 = vector.multi_reduction <add>, %8, %cst_2 [1] : vector<16x128xf32> to vector<16xf32>
    %10 = vector.shape_cast %9 : vector<16xf32> to vector<16x1xf32>
    %11 = math.log %10 : vector<16x1xf32>
    %cst_3 = arith.constant dense<0.000000e+00> : vector<16xf32>
    %12 = vector.multi_reduction <add>, %7, %cst_3 [1] : vector<16x128xf32> to vector<16xf32>
    %13 = vector.shape_cast %12 : vector<16xf32> to vector<16x1xf32>
    %14 = tpu.iota {dimensions = array<i32: 1>} : vector<16x128xi32>
    %c0_4 = arith.constant 0 : index
    %c0_5 = arith.constant 0 : index
    %15 = vector.load %arg2[%c0_4, %c0_5] : memref<16x1xi32, #tpu.memory_space<vmem>>, vector<16x1xi32>
    %16 = vector.broadcast %15 : vector<16x1xi32> to vector<16x128xi32>
    %17 = arith.cmpi eq, %14, %16 : vector<16x128xi32>
    %cst_6 = arith.constant 0.000000e+00 : f32
    %18 = vector.broadcast %cst_6 : f32 to vector<16x128xf32>
    %19 = arith.select %17, %7, %18 : vector<16x128xi1>, vector<16x128xf32>
    %cst_7 = arith.constant dense<0.000000e+00> : vector<16xf32>
    %20 = vector.multi_reduction <add>, %19, %cst_7 [1] : vector<16x128xf32> to vector<16xf32>
    %21 = vector.shape_cast %20 : vector<16xf32> to vector<16x1xf32>
    %cst_8 = arith.constant 1.280000e+02 : f32
    %22 = vector.broadcast %cst_8 : f32 to vector<16x1xf32>
    %23 = arith.mulf %22, %11 : vector<16x1xf32>
    %24 = arith.subf %13, %23 : vector<16x1xf32>
    %cst_9 = arith.constant 7.87401571E-4 : f32
    %25 = vector.broadcast %cst_9 : f32 to vector<16x1xf32>
    %26 = arith.mulf %25, %24 : vector<16x1xf32>
    %27 = arith.subf %21, %11 : vector<16x1xf32>
    %cst_10 = arith.constant 0.899212599 : f32
    %28 = vector.broadcast %cst_10 : f32 to vector<16x1xf32>
    %29 = arith.mulf %28, %27 : vector<16x1xf32>
    %30 = arith.addf %26, %29 : vector<16x1xf32>
    %cst_11 = arith.constant 0.000000e+00 : f32
    %31 = vector.broadcast %cst_11 : f32 to vector<16x1xf32>
    %32 = arith.subf %31, %30 : vector<16x1xf32>
    %c0_12 = arith.constant 0 : index
    %c0_13 = arith.constant 0 : index
    %33 = memref.load %arg3[%c0_12, %c0_13] : memref<1x1xf32, #tpu.memory_space<smem>>
    %34 = vector.shape_cast %32 : vector<16x1xf32> to vector<1x16x1xf32>
    %cst_14 = arith.constant dense<0.000000e+00> : vector<1xf32>
    %35 = vector.multi_reduction <add>, %34, %cst_14 [1, 2] : vector<1x16x1xf32> to vector<1xf32>
    %36 = vector.shape_cast %35 : vector<1xf32> to vector<1x1x1xf32>
    %37 = vector.extract %36[0, 0, 0] : f32 from vector<1x1x1xf32>
    %38 = arith.addf %33, %37 : f32
    %c0_15 = arith.constant 0 : index
    %c0_16 = arith.constant 0 : index
    %39 = memref.load %arg3[%c0_15, %c0_16] : memref<1x1xf32, #tpu.memory_space<smem>>
    memref.store %38, %arg3[%c0_15, %c0_16] : memref<1x1xf32, #tpu.memory_space<smem>>
    %c0_i32_17 = arith.constant 0 : i32
    %40 = arith.cmpi eq, %arg0, %c0_i32_17 : i32
    %41 = arith.extui %40 : i1 to i32
    %c0_i32_18 = arith.constant 0 : i32
    %42 = arith.cmpi ne, %41, %c0_i32_18 : i32
    scf.if %42 {
      %c0_19 = arith.constant 0 : index
      %c0_20 = arith.constant 0 : index
      %43 = memref.load %arg3[%c0_19, %c0_20] : memref<1x1xf32, #tpu.memory_space<smem>>
      %cst_21 = arith.constant 6.250000e-02 : f32
      %44 = arith.mulf %43, %cst_21 : f32
      %c0_22 = arith.constant 0 : index
      %c0_23 = arith.constant 0 : index
      %45 = memref.load %arg3[%c0_22, %c0_23] : memref<1x1xf32, #tpu.memory_space<smem>>
      memref.store %44, %arg3[%c0_22, %c0_23] : memref<1x1xf32, #tpu.memory_space<smem>>
    } else {
    }
    return
  }
  func.func @transform_0(%arg0: i32) -> (i32, i32) {
    %c0_i32 = arith.constant 0 : i32
    %c0_i32_0 = arith.constant 0 : i32
    return %arg0, %c0_i32 : i32, i32
  }
  func.func @transform_1(%arg0: i32) -> (i32, i32) {
    %c0_i32 = arith.constant 0 : i32
    %c0_i32_0 = arith.constant 0 : i32
    return %arg0, %c0_i32 : i32, i32
  }
  func.func @transform_2(%arg0: i32) -> (i32, i32) {
    %c0_i32 = arith.constant 0 : i32
    %c0_i32_0 = arith.constant 0 : i32
    %c0_i32_1 = arith.constant 0 : i32
    return %c0_i32, %c0_i32_0 : i32, i32
  }
}

</mosaic_0001>

<llo_original>
// kernel: tpu_custom_call.1
$region0: #{tpu_custom_call.1}
  #allocation0 [shape = 'u32[]', space=smem, size = 0x4, offset = 0x4, fixed_abs, tag = 'smem constant byte address 0x4 - core index']
  #allocation1 [shape = 'u32[144,128]{1,0:T(1,128)}', space=vmem, size = 0x12000, scoped, tag = 'internal scratch']
  %s0 = inlined_call_operand.vmem [shape: f32[16,128], index: 0, kind: input, shape index: {}]
  %s1 = inlined_call_operand.vmem [shape: s32[16,1], index: 1, kind: input, shape index: {}]
  %s2 = inlined_call_operand.hbm [shape: f32[1,1], index: 2, kind: output, shape index: {}]
  %s3 = sld [smem:[#allocation0]]
  $region26: #{tpu_custom_call.1} parent=0
    _
  %s5 = ssub.s32 1, %s3
  %s6 = scalar_select 0, %s5, %s3
  $region1: #{tpu_custom_call.1} parent=0
    #allocation2 [shape = 'u8[512]{0}', space=smem, size = 0x200, scoped, tag = 'output window, operand 0, single buffered']
    #allocation3 [shape = 's32[1]{0}', space=sflag, size = 0x4, scoped, tag = 'scoped memory for tpu_custom_call.1']
    %7 = vsyncpa [#allocation3], 0
    // Predicated region
    $region2: #{tpu_custom_call.1} parent=1 // pred_check
      _
    $region3: #{tpu_custom_call.1} parent=1 // pred_check_branch
      %9 = sbr.rel (0) target = $region5
    $region4: #{tpu_custom_call.1} parent=1 // pred_region
      _
    $region5: #{tpu_custom_call.1} parent=1 // pred_fallthru
      _
    // Predicated region
    $region6: #{tpu_custom_call.1} parent=1 // pred_check
      _
    $region7: #{tpu_custom_call.1} parent=1 // pred_check_branch
      %11 = sbr.rel (0) target = $region9
    $region8: #{tpu_custom_call.1} parent=1 // pred_region
      _
    $region9: #{tpu_custom_call.1} parent=1 // pred_fallthru
      _
    %p12 = scmp.eq.s32.totalorder 0, 0
    // Predicated region
    $region10: #{tpu_custom_call.1} parent=1 // pred_check
      %p13 = pneg %p12
    $region11: #{tpu_custom_call.1} parent=1 // pred_check_branch
      %15 = sbr.rel (%p13) target = $region13
    $region12: #{tpu_custom_call.1} parent=1 // pred_region
      %s16 = scalar_lea.smem [#allocation2], 0
      %17 = sst [smem:[%s16]] 0.0
    $region13: #{tpu_custom_call.1} parent=1 // pred_fallthru
      _
    %v18 = vld [vmem:[%s0] sm:$0xff]
    %v19 = vld [vmem:[%s0 + $0x8] sm:$0xff]
    %20 = vmax.xlane.f32.xlu0 %v18
    %v21 = vpop.xlane.xlu0 %20
    %22 = vmax.xlane.f32.xlu0 %v19
    %v23 = vpop.xlane.xlu0 %22
    %v24 = vsub.f32 %v18, %v21
    %v25 = vsub.f32 %v19, %v23
    %v26 = vmul.f32 %v24, 1.442695
    %v27 = vpow.pop %v26
    %v28 = vmul.f32 %v25, 1.442695
    %v29 = vpow.pop %v28
    %30 = vadd.xlane.f32.xlu0 %v27
    %v31 = vpop.xlane.xlu0 %30
    %32 = vadd.xlane.f32.xlu0 %v29
    %v33 = vpop.xlane.xlu0 %32
    %v34 = vlog2.pop %v31
    %v35 = vmul.f32 %v34, 0.6931472
    %v36 = vlog2.pop %v33
    %v37 = vmul.f32 %v36, 0.6931472
    %38 = vadd.xlane.f32.xlu0 %v24
    %v39 = vpop.xlane.xlu0 %38
    %40 = vadd.xlane.f32.xlu0 %v25
    %v41 = vpop.xlane.xlu0 %40
    %v42 = vlaneseq
    %v43 = vand.u32 %v42, 127
    %v44 = vld [vmem:[%s1] sm:$0xff]
    %v45 = vld [vmem:[%s1 + $0x8] sm:$0xff]
    %46 = vset.pattern.permute.xlu0 0
    %47 = vperm.xlu0 %46, %v44
    %v48 = vpop.permute.xlu0 %47
    %49 = vset.pattern.permute.xlu0 0
    %50 = vperm.xlu0 %49, %v45
    %v51 = vpop.permute.xlu0 %50
    %vm52 = vcmp.eq.s32.totalorder %v43, %v48
    %vm53 = vcmp.eq.s32.totalorder %v43, %v51
    %v54 = vsel %vm52, %v24, 0.0
    %v55 = vsel %vm53, %v25, 0.0
    %56 = vadd.xlane.f32.xlu0 %v54
    %v57 = vpop.xlane.xlu0 %56
    %58 = vadd.xlane.f32.xlu0 %v55
    %v59 = vpop.xlane.xlu0 %58
    %v60 = vmul.f32 %v35, 128.0
    %v61 = vmul.f32 %v37, 128.0
    %v62 = vsub.f32 %v39, %v60
    %v63 = vsub.f32 %v41, %v61
    %v64 = vmul.f32 %v62, 0.0007874016
    %v65 = vmul.f32 %v63, 0.0007874016
    %v66 = vsub.f32 %v57, %v35
    %v67 = vsub.f32 %v59, %v37
    %v68 = vmul.f32 %v66, 0.8992126
    %v69 = vmul.f32 %v67, 0.8992126
    %v70 = vadd.f32 %v64, %v68
    %v71 = vadd.f32 %v65, %v69
    %v72 = vsub.f32 0.0, %v70
    %v73 = vsub.f32 0.0, %v71
    %s74 = sld [smem:[#allocation2]]
    %vm75 = vcmask 7168
    %v76 = vsel %vm75, %v72, 0.0
    %v77 = vsel %vm75, %v73, 0.0
    %v78 = vadd.f32 %v76, %v77
    %79 = vadd.xlane.f32.xlu0 %v78
    %v80 = vpop.xlane.xlu0 %79
    %v81 = vrot.slane %v80, 4
    %v82 = vadd.f32 %v80, %v81
    %v83 = vrot.slane %v82, 2
    %v84 = vadd.f32 %v82, %v83
    %v85 = vrot.slane %v84, 1
    %v86 = vadd.f32 %v84, %v85
    %s87 = vtos %v86
    %s88 = sadd.f32 %s74, %s87
    %s89 = scalar_lea.smem [#allocation2], 0
    %90 = sst [smem:[%s89]] %s88
    // Predicated region
    $region14: #{tpu_custom_call.1} parent=1 // pred_check
      %p91 = pneg %p12
    $region15: #{tpu_custom_call.1} parent=1 // pred_check_branch
      %93 = sbr.rel (%p91) target = $region17
    $region16: #{tpu_custom_call.1} parent=1 // pred_region
      %s94 = sld [smem:[#allocation2]]
      %s95 = smul.f32 %s94, 0.0625
      %96 = sst [smem:[%s89]] %s95
    $region17: #{tpu_custom_call.1} parent=1 // pred_fallthru
      _
    // Predicated region
    $region18: #{tpu_custom_call.1} parent=1 // pred_check
      _
    $region19: #{tpu_custom_call.1} parent=1 // pred_check_branch
      %98 = sbr.rel (0) target = $region21
    $region20: #{tpu_custom_call.1} parent=1 // pred_region
      %s100 = ssub.s32 16, 16
      %101 = vsyncadd [#allocation3], %s100
      %104 = dma.smem_to_hbm [#allocation2], 16, %s2, [#allocation3]
    $region21: #{tpu_custom_call.1} parent=1 // pred_fallthru
      _
    // Predicated region
    $region22: #{tpu_custom_call.1} parent=1 // pred_check
      _
    $region23: #{tpu_custom_call.1} parent=1 // pred_check_branch
      %106 = sbr.rel (0) target = $region25
    $region24: #{tpu_custom_call.1} parent=1 // pred_region
      %107 = dma.done [#allocation3], 16
    $region25: #{tpu_custom_call.1} parent=1 // pred_fallthru
      _
    %108 = sfence
    %109 = vsyncpa [#allocation3], 1

</llo_original>
